<compile_context>
chip_gen: v7x
topology: tpu7x:2x2x1
jax: 0.10.0
libtpu: 0.0.40
codegen_flags: <defaults>
</compile_context>

<pallas_src>
import functools

import jax
import jax.numpy as jnp
from jax.experimental import pallas as pl
from jax.experimental.pallas import tpu as pltpu

LANE = 128
MAX_TILE = 512


def _round_up(n, m):
    return ((n + m - 1) // m) * m


def _sublane_multiple(dtype):
    # f32 -> 8, bf16 -> 16, int8/fp8 -> 32 (sub-32-bit dtypes pack sublanes).
    return max(8, 32 // jnp.dtype(dtype).itemsize)


def _pick_tile(extent, max_tile=MAX_TILE):
    """Largest multiple of 128 that divides `extent` (itself a 128-multiple)
    and is <= max_tile.  Guarantees zero extra weight traffic beyond the
    128-rounded active extent."""
    units = extent // LANE
    max_units = max(1, max_tile // LANE)
    for d in range(min(units, max_units), 0, -1):
        if units % d == 0:
            return d * LANE
    return LANE


def _pick_tm(batch, sub):
    """Pick (tm, padded_batch) minimizing wasted M rows; tm <= 256."""
    bp0 = _round_up(batch, sub)
    if bp0 <= 256:
        return bp0, bp0
    best_tm, best_pad = None, None
    for cand in (256, 128, 64):          # all multiples of 8/16/32 sublanes
        pad = _round_up(batch, cand) - batch
        if best_pad is None or pad < best_pad:
            best_tm, best_pad = cand, pad
    return best_tm, _round_up(batch, best_tm)


def _num_tensorcores():
    """2 on v7x (megacore split matters), else 1.  Never raises."""
    try:
        kind = jax.devices()[0].device_kind.lower()
        if "v7" in kind or "7x" in kind:
            return 2
    except Exception:
        pass
    return 1


# ----------------------------------------------------------------- kernels --

def _dl_kernel_bias_1k(x_ref, wt_ref, b_ref, o_ref):
    acc = jnp.dot(x_ref[...], wt_ref[...], preferred_element_type=jnp.float32)
    o_ref[...] = (acc + b_ref[...].astype(jnp.float32)).astype(o_ref.dtype)


def _dl_kernel_nobias_1k(x_ref, wt_ref, o_ref):
    o_ref[...] = jnp.dot(x_ref[...], wt_ref[...],
                         preferred_element_type=jnp.float32).astype(o_ref.dtype)


def _dl_kernel_bias(x_ref, wt_ref, b_ref, o_ref, acc_ref):
    k = pl.program_id(2)
    nk = pl.num_programs(2)
    prod = jnp.dot(x_ref[...], wt_ref[...], preferred_element_type=jnp.float32)

    @pl.when(k == 0)
    def _():
        acc_ref[...] = prod                     # no zero-fill + RMW

    @pl.when(jnp.logical_and(k > 0, k < nk - 1))
    def _():
        acc_ref[...] += prod

    @pl.when(k == nk - 1)
    def _():                                    # skip final acc store pass
        o_ref[...] = (acc_ref[...] + prod
                      + b_ref[...].astype(jnp.float32)).astype(o_ref.dtype)


def _dl_kernel_nobias(x_ref, wt_ref, o_ref, acc_ref):
    k = pl.program_id(2)
    nk = pl.num_programs(2)
    prod = jnp.dot(x_ref[...], wt_ref[...], preferred_element_type=jnp.float32)

    @pl.when(k == 0)
    def _():
        acc_ref[...] = prod

    @pl.when(jnp.logical_and(k > 0, k < nk - 1))
    def _():
        acc_ref[...] += prod

    @pl.when(k == nk - 1)
    def _():
        o_ref[...] = (acc_ref[...] + prod).astype(o_ref.dtype)


def _make_w_spec(tk, tn, index_map, multi_k):
    if multi_k:
        try:
            # 3-deep weight-stream pipeline hides first/last DMA on short grids.
            return pl.BlockSpec((tk, tn), index_map,
                                pipeline_mode=pl.Buffered(3))
        except TypeError:       # older pallas without pipeline_mode kwarg
            pass
    return pl.BlockSpec((tk, tn), index_map)


# ------------------------------------------------------------------ wrapper --

@functools.partial(jax.jit,
                   static_argnames=("out_features", "has_bias", "two_cores"))
def _dynamic_linear_impl(x, wt_full, b_full, *, out_features, has_bias,
                         two_cores):
    """y = x @ W.T (+ b) where W = weight[:out_features, :x.shape[1]].

    wt_full: (Kmax_p, Nmax_p) pre-transposed, zero-padded max weight.
    b_full : (1, Nmax_p) zero-padded max bias, f32 (ignored if has_bias=False).
    """
    B, in_features = x.shape
    kmax_p, nmax_p = wt_full.shape
    w_dtype = wt_full.dtype
    out_dtype = x.dtype

    sub = _sublane_multiple(w_dtype)
    tm, bp = _pick_tm(B, sub)

    # Active extents rounded only to the lane width -> no extra weight stream.
    kp = _round_up(in_features, LANE)
    np_ = _round_up(out_features, LANE)
    assert kp <= kmax_p and np_ <= nmax_p, "active size exceeds max layer size"

    tk = _pick_tile(kp)
    tn = _pick_tile(np_)

    # v7x megacore: make sure there are >= 2 parallel tiles when possible.
    if two_cores and (np_ // tn) * (bp // tm) == 1 and np_ >= 2 * LANE:
        half = max(LANE, (np_ // 2) // LANE * LANE)
        tn = _pick_tile(np_, max_tile=half)

    n_n, n_m, n_k = np_ // tn, bp // tm, kp // tk

    # Zero-pad the activation only when needed.  The K tail MUST be zero so
    # real weight rows in [in_features, kp) contribute exactly 0 (matches the
    # PyTorch weight slice).
    if bp != B or kp != in_features or x.dtype != w_dtype:
        xp = jnp.zeros((bp, kp), w_dtype).at[:B, :in_features].set(
            x.astype(w_dtype))
    else:
        xp = x

    vmem_limit = 32 * 1024 * 1024       # <= ~48 MiB guidance for v7x
    out_shape = jax.ShapeDtypeStruct((bp, np_), out_dtype)

    if n_k == 1:
        # Fast path: no accumulator scratch, no pl.when, 2-D grid.
        grid = (n_n, n_m)
        x_spec = pl.BlockSpec((tm, tk), lambda n, m: (m, 0))
        w_spec = _make_w_spec(tk, tn, lambda n, m: (0, n), multi_k=False)
        o_spec = pl.BlockSpec((tm, tn), lambda n, m: (m, n))
        compiler_params = pltpu.CompilerParams(
            dimension_semantics=("parallel", "parallel"),
            vmem_limit_bytes=vmem_limit)
        if has_bias:
            b_spec = pl.BlockSpec((1, tn), lambda n, m: (0, n))
            yp = pl.pallas_call(
                _dl_kernel_bias_1k, out_shape=out_shape, grid=grid,
                in_specs=[x_spec, w_spec, b_spec], out_specs=o_spec,
                compiler_params=compiler_params)(xp, wt_full, b_full)
        else:
            yp = pl.pallas_call(
                _dl_kernel_nobias_1k, out_shape=out_shape, grid=grid,
                in_specs=[x_spec, w_spec], out_specs=o_spec,
                compiler_params=compiler_params)(xp, wt_full)
    else:
        grid = (n_n, n_m, n_k)          # (N, M, K), reduction last
        x_spec = pl.BlockSpec((tm, tk), lambda n, m, k: (m, k))
        w_spec = _make_w_spec(tk, tn, lambda n, m, k: (k, n), multi_k=True)
        o_spec = pl.BlockSpec((tm, tn), lambda n, m, k: (m, n))
        compiler_params = pltpu.CompilerParams(
            dimension_semantics=("parallel", "parallel", "arbitrary"),
            vmem_limit_bytes=vmem_limit)
        scratch = [pltpu.VMEM((tm, tn), jnp.float32)]
        if has_bias:
            b_spec = pl.BlockSpec((1, tn), lambda n, m, k: (0, n))
            yp = pl.pallas_call(
                _dl_kernel_bias, out_shape=out_shape, grid=grid,
                in_specs=[x_spec, w_spec, b_spec], out_specs=o_spec,
                scratch_shapes=scratch,
                compiler_params=compiler_params)(xp, wt_full, b_full)
        else:
            yp = pl.pallas_call(
                _dl_kernel_nobias, out_shape=out_shape, grid=grid,
                in_specs=[x_spec, w_spec], out_specs=o_spec,
                scratch_shapes=scratch,
                compiler_params=compiler_params)(xp, wt_full)

    if bp != B or np_ != out_features:
        yp = yp[:B, :out_features]
    return yp


# ------------------------------------------------------------------- module --

class DynamicLinear:
    """JAX / Pallas port of the PyTorch DynamicLinear module (forward only).

    `compute_dtype=jnp.bfloat16` optionally stores the kernel weight layout in
    bf16 (halves weight HBM traffic; f32 MXU accumulation is kept).  Default
    keeps everything in the parameter dtype for strict PyTorch parity.
    """

    def __init__(self, max_in_features, max_out_features, bias=True,
                 key=None, dtype=jnp.float32, compute_dtype=None):
        self.max_in_features = max_in_features
        self.max_out_features = max_out_features
        self.bias = bias
        self.active_out_features = max_out_features
        self.dtype = dtype
        w_dtype = compute_dtype if compute_dtype is not None else dtype

        if key is None:
            key = jax.random.PRNGKey(0)
        kw, kb = jax.random.split(key)
        # nn.Linear default init: U(-1/sqrt(in), 1/sqrt(in)).
        bound = 1.0 / float(max_in_features) ** 0.5
        self.weight = jax.random.uniform(
            kw, (max_out_features, max_in_features), dtype=dtype,
            minval=-bound, maxval=bound)
        self.bias_param = (
            jax.random.uniform(kb, (max_out_features,), dtype=dtype,
                               minval=-bound, maxval=bound)
            if bias else None)

        # Lane-aligned (128) max layout; per-call tiles always divide the
        # 128-rounded *active* extents, so they index safely into this array.
        kmax_p = _round_up(max_in_features, LANE)
        nmax_p = _round_up(max_out_features, LANE)

        # Pre-transpose + pre-pad the max-size weight ONCE (layout for x@W.T).
        self.weight_t_padded = (
            jnp.zeros((kmax_p, nmax_p), w_dtype)
            .at[:max_in_features, :max_out_features]
            .set(self.weight.T.astype(w_dtype)))
        # Bias kept in f32 (tiny; added in f32 inside the kernel anyway).
        self.bias_padded = (
            jnp.zeros((1, nmax_p), jnp.float32)
            .at[0, :max_out_features].set(self.bias_param.astype(jnp.float32))
            if bias else None)

        self._two_cores = _num_tensorcores() >= 2

    def get_active_weight(self, out_features, in_features):
        return self.weight[:out_features, :in_features]

    def get_active_bias(self, out_features):
        return self.bias_param[:out_features] if self.bias else None

    def __call__(self, x, out_features=None):
        if out_features is None:
            out_features = self.active_out_features
        return _dynamic_linear_impl(
            x, self.weight_t_padded, self.bias_padded,
            out_features=int(out_features), has_bias=self.bias,
            two_cores=self._two_cores)


if __name__ == "__main__":
    key = jax.random.PRNGKey(0)
    k1, k2, k3, k4, k5 = jax.random.split(key, 5)
    hi = jax.lax.Precision.HIGHEST

    # 1) Small config (single-K fast path): max 32->24, batch=2, in=16, out=8.
    layer = DynamicLinear(32, 24, bias=True, key=k1)
    x = jax.random.normal(k2, (2, 16), dtype=jnp.float32)
    y = jax.block_until_ready(layer(x, out_features=8))
    y_ref = jnp.matmul(x, layer.weight[:8, :16].T, precision=hi) \
        + layer.bias_param[:8]
    assert y.shape == (2, 8), y.shape
    assert jnp.allclose(y, y_ref, atol=1e-5, rtol=1e-5), "bias path mismatch"

    # 2) No-bias path.
    layer_nb = DynamicLinear(32, 24, bias=False, key=k3)
    y_nb = jax.block_until_ready(layer_nb(x, out_features=24))
    y_nb_ref = jnp.matmul(x, layer_nb.weight[:24, :16].T, precision=hi)
    assert y_nb.shape == (2, 24), y_nb.shape
    assert jnp.allclose(y_nb, y_nb_ref, atol=1e-5, rtol=1e-5), "no-bias mismatch"

    # 3) Multi-K-tile grid: K accumulation across grid steps + active slice of
    #    the max weight (no extra weight columns/rows streamed).
    layer_big = DynamicLinear(640, 384, bias=True, key=k4)
    xb = jax.random.normal(k2, (16, 640), dtype=jnp.float32)
    yb = jax.block_until_ready(layer_big(xb, out_features=300))
    yb_ref = jnp.matmul(xb, layer_big.weight[:300, :640].T, precision=hi) \
        + layer_big.bias_param[:300]
    assert yb.shape == (16, 300), yb.shape
    assert jnp.allclose(yb, yb_ref, atol=1e-4, rtol=1e-4), "tiled path mismatch"

    # 3b) Force the v7x two-core N split path (correct on any generation).
    yb2 = jax.block_until_ready(_dynamic_linear_impl(
        xb, layer_big.weight_t_padded, layer_big.bias_padded,
        out_features=300, has_bias=True, two_cores=True))
    assert jnp.allclose(yb2, yb_ref, atol=1e-4, rtol=1e-4), "split-N mismatch"

    # 4) bf16 weight-storage option (halved weight HBM traffic, f32 acc).
    layer_bf = DynamicLinear(256, 192, bias=True, key=k5,
                             compute_dtype=jnp.bfloat16)
    xc = jax.random.normal(k3, (4, 200), dtype=jnp.float32)
    yc = jax.block_until_ready(layer_bf(xc, out_features=160))
    yc_ref = jnp.matmul(xc, layer_bf.weight[:160, :200].T, precision=hi) \
        + layer_bf.bias_param[:160]
    assert yc.shape == (4, 160), yc.shape
    assert jnp.allclose(yc, yc_ref, atol=2e-2, rtol=2e-2), "bf16 path mismatch"

    print("KERNEL_OK")
</pallas_src>

<mosaic_0001>
module attributes {stable_mosaic.version = 11 : i64} {
  func.func @_dl_kernel_bias_1k(%arg0: i32, %arg1: i32, %arg2: memref<8x128xf32, #tpu.memory_space<vmem>>, %arg3: memref<128x128xf32, #tpu.memory_space<vmem>>, %arg4: memref<1x128xf32, #tpu.memory_space<vmem>>, %arg5: memref<8x128xf32, #tpu.memory_space<vmem>>) attributes {dimension_semantics = [#tpu.dimension_semantics<parallel>, #tpu.dimension_semantics<parallel>], iteration_bounds = array<i64: 1, 1>, scalar_prefetch = 0 : i64, scratch_operands = 0 : i64, tpu.core_type = #tpu.core_type<tc>, window_params = [{transform_indices = @transform_0, window_bounds = array<i64: 8, 128>}, {transform_indices = @transform_1, window_bounds = array<i64: 128, 128>}, {transform_indices = @transform_2, window_bounds = array<i64: 1, 128>}, {transform_indices = @transform_3, window_bounds = array<i64: 8, 128>}]} {
    %c0 = arith.constant 0 : index
    %c0_0 = arith.constant 0 : index
    %0 = vector.load %arg2[%c0, %c0_0] : memref<8x128xf32, #tpu.memory_space<vmem>>, vector<8x128xf32>
    %c0_1 = arith.constant 0 : index
    %c0_2 = arith.constant 0 : index
    %1 = vector.load %arg3[%c0_1, %c0_2] : memref<128x128xf32, #tpu.memory_space<vmem>>, vector<128x128xf32>
    %cst = arith.constant dense<0.000000e+00> : vector<8x128xf32>
    %2 = tpu.matmul %0, %1, %cst {dimension_numbers = #tpu.dot_dimension_numbers<[1], [0], [0], [1], [0, 0, 1, 1], [], []>} : vector<8x128xf32>, vector<128x128xf32>, vector<8x128xf32> -> vector<8x128xf32>
    %c0_3 = arith.constant 0 : index
    %c0_4 = arith.constant 0 : index
    %3 = vector.load %arg4[%c0_3, %c0_4] : memref<1x128xf32, #tpu.memory_space<vmem>>, vector<1x128xf32>
    %4 = vector.broadcast %3 : vector<1x128xf32> to vector<8x128xf32>
    %5 = arith.addf %2, %4 : vector<8x128xf32>
    %c0_5 = arith.constant 0 : index
    %c0_6 = arith.constant 0 : index
    %6 = vector.load %arg5[%c0_5, %c0_6] : memref<8x128xf32, #tpu.memory_space<vmem>>, vector<8x128xf32>
    tpu.vector_store %arg5[%c0_5, %c0_6], %5 {strides = array<i32>} : memref<8x128xf32, #tpu.memory_space<vmem>>, vector<8x128xf32>,
    return
  }
  func.func @transform_0(%arg0: i32, %arg1: i32) -> (i32, i32) {
    %c0_i32 = arith.constant 0 : i32
    %c0_i32_0 = arith.constant 0 : i32
    return %arg1, %c0_i32 : i32, i32
  }
  func.func @transform_1(%arg0: i32, %arg1: i32) -> (i32, i32) {
    %c0_i32 = arith.constant 0 : i32
    %c0_i32_0 = arith.constant 0 : i32
    return %c0_i32, %arg0 : i32, i32
  }
  func.func @transform_2(%arg0: i32, %arg1: i32) -> (i32, i32) {
    %c0_i32 = arith.constant 0 : i32
    %c0_i32_0 = arith.constant 0 : i32
    return %c0_i32, %arg0 : i32, i32
  }
  func.func @transform_3(%arg0: i32, %arg1: i32) -> (i32, i32) {
    %c0_i32 = arith.constant 0 : i32
    return %arg1, %arg0 : i32, i32
  }
}

</mosaic_0001>

<llo_original>
// kernel: _dynamic_linear_impl.1
$region0: #{_dynamic_linear_impl.1}
  #allocation0 [shape = 'u32[]', space=smem, size = 0x4, offset = 0x4, fixed_abs, tag = 'smem constant byte address 0x4 - core index']
  #allocation1 [shape = 'u32[144,128]{1,0:T(1,128)}', space=vmem, size = 0x12000, scoped, tag = 'internal scratch']
  %s0 = inlined_call_operand.vmem [shape: f32[8,128], index: 0, kind: input, shape index: {}]
  %s1 = inlined_call_operand.hbm [shape: f32[128,128], index: 1, kind: input, shape index: {}]
  %s2 = inlined_call_operand.vmem [shape: f32[1,128], index: 2, kind: input, shape index: {}]
  %s3 = inlined_call_operand.vmem [shape: f32[8,128], index: 3, kind: output, shape index: {}]
  %s4 = sld [smem:[#allocation0]]
  $region26: #{_dynamic_linear_impl.1} parent=0
    _
  %s6 = ssub.s32 1, %s4
  %s7 = scalar_select 0, %s6, %s4
  $region1: #{_dynamic_linear_impl.1} parent=0
    #allocation2 [shape = 'u8[65536]{0}', space=vmem, size = 0x10000, scoped, tag = 'input window, operand 1, single buffered']
    #allocation3 [shape = 's32[1]{0}', space=sflag, size = 0x4, scoped, tag = 'scoped memory for _dynamic_linear_impl.1']
    %8 = vsyncpa [#allocation3], 0
    // Predicated region
    $region2: #{_dynamic_linear_impl.1} parent=1 // pred_check
      _
    $region3: #{_dynamic_linear_impl.1} parent=1 // pred_check_branch
      %10 = sbr.rel (0) target = $region5
    $region4: #{_dynamic_linear_impl.1} parent=1 // pred_region
      _
    $region5: #{_dynamic_linear_impl.1} parent=1 // pred_fallthru
      _
    // Predicated region
    $region6: #{_dynamic_linear_impl.1} parent=1 // pred_check
      _
    $region7: #{_dynamic_linear_impl.1} parent=1 // pred_check_branch
      %12 = sbr.rel (0) target = $region9
    $region8: #{_dynamic_linear_impl.1} parent=1 // pred_region
      %s14 = ssub.s32 2048, 2048
      %15 = vsyncadd [#allocation3], %s14
      %s16 = sshll.u32 [#allocation2], 4
      %s17 = int_to_ptr.vmem [resolvable:$true] %s16
      %22 = dma.hbm_to_vmem [thread:$0]  %s1, 2048, %s17, [#allocation3], 128, 128, 8
    $region9: #{_dynamic_linear_impl.1} parent=1 // pred_fallthru
      _
    // Predicated region
    $region10: #{_dynamic_linear_impl.1} parent=1 // pred_check
      _
    $region11: #{_dynamic_linear_impl.1} parent=1 // pred_check_branch
      %24 = sbr.rel (0) target = $region13
    $region12: #{_dynamic_linear_impl.1} parent=1 // pred_region
      _
    $region13: #{_dynamic_linear_impl.1} parent=1 // pred_fallthru
      _
    // Predicated region
    $region14: #{_dynamic_linear_impl.1} parent=1 // pred_check
      _
    $region15: #{_dynamic_linear_impl.1} parent=1 // pred_check_branch
      %26 = sbr.rel (0) target = $region17
    $region16: #{_dynamic_linear_impl.1} parent=1 // pred_region
      %27 = dma.done [#allocation3], 2048
    $region17: #{_dynamic_linear_impl.1} parent=1 // pred_fallthru
      _
    %v28 = vld [vmem:[%s0] sm:$0xff]
    %v29 = vld [vmem:[#allocation2] sm:$0xff]
    %v30 = vld [vmem:[#allocation2 + $0x8] sm:$0xff]
    %v31 = vld [vmem:[#allocation2 + $0x10] sm:$0xff]
    %v32 = vld [vmem:[#allocation2 + $0x18] sm:$0xff]
    %v33 = vld [vmem:[#allocation2 + $0x20] sm:$0xff]
    %v34 = vld [vmem:[#allocation2 + $0x28] sm:$0xff]
    %v35 = vld [vmem:[#allocation2 + $0x30] sm:$0xff]
    %v36 = vld [vmem:[#allocation2 + $0x38] sm:$0xff]
    %v37 = vld [vmem:[#allocation2 + $0x40] sm:$0xff]
    %v38 = vld [vmem:[#allocation2 + $0x48] sm:$0xff]
    %v39 = vld [vmem:[#allocation2 + $0x50] sm:$0xff]
    %v40 = vld [vmem:[#allocation2 + $0x58] sm:$0xff]
    %v41 = vld [vmem:[#allocation2 + $0x60] sm:$0xff]
    %v42 = vld [vmem:[#allocation2 + $0x68] sm:$0xff]
    %v43 = vld [vmem:[#allocation2 + $0x70] sm:$0xff]
    %v44 = vld [vmem:[#allocation2 + $0x78] sm:$0xff]
    %v45 = vld [vmem:[%s2] sm:$0x1]
    %v47 = vlaneseq
    %v48 = vshrl.u32 %v47, 7
    %v49 = vsub.s32 0, %v48
    %v50 = vrot.slane %v45, %v49
    %52 = vmatprep.subr.mxu0 0.0
    %53 = vmatpush1.msra.mxu0 %v29
    %54 = vmatprep.subr.mxu0 0.0
    %55 = vmatpush1.msra.mxu0 %v30
    %56 = vmatprep.subr.mxu0 0.0
    %57 = vmatpush1.msra.mxu0 %v31
    %58 = vmatprep.subr.mxu0 0.0
    %59 = vmatpush1.msra.mxu0 %v32
    %60 = vmatprep.subr.mxu0 0.0
    %61 = vmatpush1.msra.mxu0 %v33
    %62 = vmatprep.subr.mxu0 0.0
    %63 = vmatpush1.msra.mxu0 %v34
    %64 = vmatprep.subr.mxu0 0.0
    %65 = vmatpush1.msra.mxu0 %v35
    %66 = vmatprep.subr.mxu0 0.0
    %67 = vmatpush1.msra.mxu0 %v36
    %68 = vmatprep.subr.mxu0 0.0
    %69 = vmatpush1.msra.mxu0 %v37
    %70 = vmatprep.subr.mxu0 0.0
    %71 = vmatpush1.msra.mxu0 %v38
    %72 = vmatprep.subr.mxu0 0.0
    %73 = vmatpush1.msra.mxu0 %v39
    %74 = vmatprep.subr.mxu0 0.0
    %75 = vmatpush1.msra.mxu0 %v40
    %76 = vmatprep.subr.mxu0 0.0
    %77 = vmatpush1.msra.mxu0 %v41
    %78 = vmatprep.subr.mxu0 0.0
    %79 = vmatpush1.msra.mxu0 %v42
    %80 = vmatprep.subr.mxu0 0.0
    %81 = vmatpush1.msra.mxu0 %v43
    %82 = vmatprep.subr.mxu0 0.0
    %83 = vmatpush1.msra.mxu0 %v44
    %84 = vmatprep.subr.mxu0 0.0
    %85 = vmatpush1.msra.mxu0 0.0
    %86 = vmatprep.subr.mxu0 0.0
    %87 = vmatpush1.msra.mxu0 0.0
    %88 = vmatprep.subr.mxu0 0.0
    %89 = vmatpush1.msra.mxu0 0.0
    %90 = vmatprep.subr.mxu0 0.0
    %91 = vmatpush1.msra.mxu0 0.0
    %92 = vmatprep.subr.mxu0 0.0
    %93 = vmatpush1.msra.mxu0 0.0
    %94 = vmatprep.subr.mxu0 0.0
    %95 = vmatpush1.msra.mxu0 0.0
    %96 = vmatprep.subr.mxu0 0.0
    %97 = vmatpush1.msra.mxu0 0.0
    %98 = vmatprep.subr.mxu0 0.0
    %99 = vmatpush1.msra.mxu0 0.0
    %100 = vmatprep.subr.mxu0 0.0
    %101 = vmatpush1.msra.mxu0 0.0
    %102 = vmatprep.subr.mxu0 0.0
    %103 = vmatpush1.msra.mxu0 0.0
    %104 = vmatprep.subr.mxu0 0.0
    %105 = vmatpush1.msra.mxu0 0.0
    %106 = vmatprep.subr.mxu0 0.0
    %107 = vmatpush1.msra.mxu0 0.0
    %108 = vmatprep.subr.mxu0 0.0
    %109 = vmatpush1.msra.mxu0 0.0
    %110 = vmatprep.subr.mxu0 0.0
    %111 = vmatpush1.msra.mxu0 0.0
    %112 = vmatprep.subr.mxu0 0.0
    %113 = vmatpush1.msra.mxu0 0.0
    %114 = vmatprep.subr.mxu0 0.0
    %115 = vmatpush1.msra.mxu0 0.0
    %116 = vmatprep.mubr.f32.mxu0 0.0
    %117 = vmatmul.mubr.f32.gmra.mrb[0].mxu0 %v28
    %v118 = vpop.f32.mrb[0].mxu0
    %v119 = vadd.f32 %v50, %v118
    %v120 = vpop.f32.mrb[0].mxu0
    %121 = vdwg.mxu0
    %122 = vst [vmem:[%s3] sm:$0xff] %v119
    // Predicated region
    $region18: #{_dynamic_linear_impl.1} parent=1 // pred_check
      _
    $region19: #{_dynamic_linear_impl.1} parent=1 // pred_check_branch
      %124 = sbr.rel (0) target = $region21
    $region20: #{_dynamic_linear_impl.1} parent=1 // pred_region
      _
    $region21: #{_dynamic_linear_impl.1} parent=1 // pred_fallthru
      _
    // Predicated region
    $region22: #{_dynamic_linear_impl.1} parent=1 // pred_check
      _
    $region23: #{_dynamic_linear_impl.1} parent=1 // pred_check_branch
      %126 = sbr.rel (0) target = $region25
    $region24: #{_dynamic_linear_impl.1} parent=1 // pred_region
      _
    $region25: #{_dynamic_linear_impl.1} parent=1 // pred_fallthru
      _
    %127 = vsyncpa [#allocation3], 1

</llo_original>
